<compile_context>
chip_gen: v5e
topology: v5e:2x2
jax: 0.10.0
libtpu: 0.0.40
codegen_flags: <defaults>
</compile_context>

<pallas_src>
from typing import Dict, NamedTuple

import jax
import jax.numpy as jnp
from jax.experimental import pallas as pl
from jax.experimental.pallas import tpu as pltpu


class ShapeSpec(NamedTuple):
    channels: int
    stride: int


# ---------------------------------------------------------------------------
# Pallas kernel: fused 3x3 "same" conv + bias + ReLU as ONE banded matmul.
#
# x_ref : (N, H+2, RW)      zero-padded image rows; RW = lane-padded (W+2)*Cin
# w_ref : (3*RW, W*Cout)    banded (im2row) weight matrix
# b_ref : (1, W*Cout)       bias tiled over W
# o_ref : (N*H, W*Cout)     lane-dense output rows
# ---------------------------------------------------------------------------
def _conv3x3_relu_kernel(x_ref, w_ref, b_ref, o_ref):
    n, hp, rw = x_ref.shape
    h = hp - 2

    # Three overlapping row windows (dy = 0, 1, 2) -> (N*H, 3*RW) patch slab.
    # Each window is a static sublane shift of the resident block; the concat
    # is lane-aligned because RW is a multiple of 128.
    slab = jnp.concatenate(
        [x_ref[:, dy:dy + h, :].reshape(n * h, rw) for dy in range(3)],
        axis=-1)

    # Single MXU matmul: K = 3*RW (384 here), N = W*Cout (128 here), f32 acc.
    acc = jnp.dot(slab, w_ref[...], preferred_element_type=jnp.float32)
    acc = jnp.maximum(acc + b_ref[...], 0.0)
    o_ref[...] = acc.astype(o_ref.dtype)


@jax.jit
def conv3x3_relu_pallas(x_nchw, weight, bias):
    """3x3 stride-1 same conv + bias + ReLU.

    x_nchw : (N, Cin, H, W)  float32
    weight : (Cout, Cin, 3, 3)
    bias   : (Cout,)
    returns: (N, Cout, H, W)
    """
    n, c_in, h, w = x_nchw.shape
    c_out = weight.shape[0]

    row_w = (w + 2) * c_in                 # one zero-padded image row, flattened
    rw = 128 * pl.cdiv(row_w, 128)         # lane-pad row width to a multiple of 128
    n_lanes = w * c_out                    # output lane width (= 128 for example sizes)
    m = n * h                              # batch folded into the matmul M dimension

    # --- glue (fused by XLA around the custom call): layout + zero padding ---
    x_rows = jnp.transpose(x_nchw, (0, 2, 3, 1)).reshape(n, h, w * c_in)
    # top/bottom halo rows + left/right halo pixels + lane padding, one pad op.
    x_pad = jnp.pad(x_rows, ((0, 0), (1, 1), (c_in, c_in + rw - row_w)))

    # --- banded weight matrix: B[dy*RW + p*Cin + ci, x*Cout + co] ------------
    #     = weight[co, ci, dy, p - x]  when 0 <= p - x <= 2, else 0.
    wt = jnp.transpose(weight, (2, 3, 1, 0))           # (3,3,Cin,Cout) [dy,dx,ci,co]
    p = jnp.arange(w + 2)
    xo = jnp.arange(w)
    dxs = jnp.arange(3)
    eq = (p[None, :, None] == xo[None, None, :] + dxs[:, None, None]
          ).astype(weight.dtype)                       # (3, W+2, W)  [dx, p, x]
    b5 = jnp.einsum("xpw,yxio->ypiwo", eq, wt)         # (3, W+2, Cin, W, Cout)
    wmat = b5.reshape(3, row_w, n_lanes)
    wmat = jnp.pad(wmat, ((0, 0), (0, rw - row_w), (0, 0))).reshape(3 * rw, n_lanes)
    brow = jnp.tile(bias, w).reshape(1, n_lanes)

    out2d = pl.pallas_call(
        _conv3x3_relu_kernel,
        out_shape=jax.ShapeDtypeStruct((m, n_lanes), x_nchw.dtype),
        grid_spec=pltpu.PrefetchScalarGridSpec(
            num_scalar_prefetch=0,
            grid=(1,),  # whole (tiny) batch in one step: no per-image loop overhead
            in_specs=[
                pl.BlockSpec((n, h + 2, rw), lambda i: (0, 0, 0)),
                pl.BlockSpec((3 * rw, n_lanes), lambda i: (0, 0)),
                pl.BlockSpec((1, n_lanes), lambda i: (0, 0)),
            ],
            out_specs=pl.BlockSpec((m, n_lanes), lambda i: (0, 0)),
        ),
        compiler_params=pltpu.CompilerParams(
            dimension_semantics=("arbitrary",)),
        cost_estimate=pl.CostEstimate(
            flops=2 * n * h * w * 9 * c_in * c_out,
            transcendentals=0,
            bytes_accessed=4 * (x_pad.size + wmat.size + brow.size + m * n_lanes)),
    )(x_pad, wmat, brow)

    # Lane-dense (N*H, W*Cout) -> (N, H, W, Cout) -> NCHW, outside the kernel.
    return jnp.transpose(out2d.reshape(n, h, w, c_out), (0, 3, 1, 2))


# ---------------------------------------------------------------------------
# Minimal concrete Backbone mirroring the detectron2 API.
# ---------------------------------------------------------------------------
class SimpleBackbone:
    def __init__(self, in_channels=4, out_channels=8, key=None):
        if key is None:
            key = jax.random.PRNGKey(0)
        kw, kb = jax.random.split(key)
        self.weight = (jax.random.normal(
            kw, (out_channels, in_channels, 3, 3), jnp.float32) * 0.1)
        self.bias = (jax.random.normal(kb, (out_channels,), jnp.float32) * 0.1)
        self._out_features = ["res1"]
        self._out_feature_channels = {"res1": out_channels}
        self._out_feature_strides = {"res1": 1}

    def forward(self, x):
        return {"res1": conv3x3_relu_pallas(x, self.weight, self.bias)}

    __call__ = forward

    @property
    def size_divisibility(self) -> int:
        return 0

    @property
    def padding_constraints(self) -> Dict[str, int]:
        return {}

    def output_shape(self):
        return {
            name: ShapeSpec(channels=self._out_feature_channels[name],
                            stride=self._out_feature_strides[name])
            for name in self._out_features
        }


if __name__ == "__main__":
    key = jax.random.PRNGKey(0)
    k_x, k_p = jax.random.split(key)

    x = jax.random.normal(k_x, (2, 4, 16, 16), jnp.float32)   # NCHW input
    backbone = SimpleBackbone(in_channels=4, out_channels=8, key=k_p)

    feats = backbone(x)
    out = jax.block_until_ready(feats["res1"])

    # Reference check against XLA conv (same semantics as nn.Conv2d pad=1).
    ref = jax.lax.conv_general_dilated(
        x, backbone.weight, window_strides=(1, 1), padding=((1, 1), (1, 1)),
        dimension_numbers=("NCHW", "OIHW", "NCHW"))
    ref = jnp.maximum(ref + backbone.bias[None, :, None, None], 0.0)

    assert out.shape == (2, 8, 16, 16)
    assert jnp.allclose(out, ref, atol=2e-4, rtol=2e-4)
    assert backbone.size_divisibility == 0
    assert backbone.padding_constraints == {}
    assert backbone.output_shape()["res1"].channels == 8
    assert backbone.output_shape()["res1"].stride == 1

    print("KERNEL_OK")
</pallas_src>

<mosaic_0001>
module attributes {stable_mosaic.version = 11 : i64} {
  func.func @_conv3x3_relu_kernel(%arg0: i32, %arg1: memref<2x18x128xf32, #tpu.memory_space<vmem>>, %arg2: memref<384x128xf32, #tpu.memory_space<vmem>>, %arg3: memref<1x128xf32, #tpu.memory_space<vmem>>, %arg4: memref<32x128xf32, #tpu.memory_space<vmem>>) attributes {dimension_semantics = [#tpu.dimension_semantics<arbitrary>], iteration_bounds = array<i64: 1>, scalar_prefetch = 0 : i64, scratch_operands = 0 : i64, tpu.core_type = #tpu.core_type<tc>, window_params = [{pipeline_mode = #tpu.pipeline_mode<synchronous>, transform_indices = @transform_0, window_bounds = array<i64: 2, 18, 128>}, {pipeline_mode = #tpu.pipeline_mode<synchronous>, transform_indices = @transform_1, window_bounds = array<i64: 384, 128>}, {pipeline_mode = #tpu.pipeline_mode<synchronous>, transform_indices = @transform_2, window_bounds = array<i64: 1, 128>}, {pipeline_mode = #tpu.pipeline_mode<synchronous>, transform_indices = @transform_3, window_bounds = array<i64: 32, 128>}]} {
    %c0 = arith.constant 0 : index
    %c0_0 = arith.constant 0 : index
    %c0_1 = arith.constant 0 : index
    %0 = vector.load %arg1[%c0, %c0_0, %c0_1] : memref<2x18x128xf32, #tpu.memory_space<vmem>>, vector<2x16x128xf32>
    %1 = vector.shape_cast %0 : vector<2x16x128xf32> to vector<32x128xf32>
    %c0_2 = arith.constant 0 : index
    %c1 = arith.constant 1 : index
    %c0_3 = arith.constant 0 : index
    %2 = vector.load %arg1[%c0_2, %c1, %c0_3] : memref<2x18x128xf32, #tpu.memory_space<vmem>>, vector<2x16x128xf32>
    %3 = vector.shape_cast %2 : vector<2x16x128xf32> to vector<32x128xf32>
    %c0_4 = arith.constant 0 : index
    %c2 = arith.constant 2 : index
    %c0_5 = arith.constant 0 : index
    %4 = vector.load %arg1[%c0_4, %c2, %c0_5] : memref<2x18x128xf32, #tpu.memory_space<vmem>>, vector<2x16x128xf32>
    %5 = vector.shape_cast %4 : vector<2x16x128xf32> to vector<32x128xf32>
    %6 = tpu.concatenate %1, %3, %5 in 1 : vector<32x128xf32>, vector<32x128xf32>, vector<32x128xf32> -> vector<32x384xf32>
    %c0_6 = arith.constant 0 : index
    %c0_7 = arith.constant 0 : index
    %7 = vector.load %arg2[%c0_6, %c0_7] : memref<384x128xf32, #tpu.memory_space<vmem>>, vector<384x128xf32>
    %cst = arith.constant dense<0.000000e+00> : vector<32x128xf32>
    %8 = tpu.matmul %6, %7, %cst {dimension_numbers = #tpu.dot_dimension_numbers<[1], [0], [0], [1], [0, 0, 1, 1], [], []>} : vector<32x384xf32>, vector<384x128xf32>, vector<32x128xf32> -> vector<32x128xf32>
    %c0_8 = arith.constant 0 : index
    %c0_9 = arith.constant 0 : index
    %9 = vector.load %arg3[%c0_8, %c0_9] : memref<1x128xf32, #tpu.memory_space<vmem>>, vector<1x128xf32>
    %10 = vector.broadcast %9 : vector<1x128xf32> to vector<32x128xf32>
    %11 = arith.addf %8, %10 : vector<32x128xf32>
    %cst_10 = arith.constant 0.000000e+00 : f32
    %12 = vector.broadcast %cst_10 : f32 to vector<32x128xf32>
    %13 = arith.maximumf %11, %12 : vector<32x128xf32>
    %c0_11 = arith.constant 0 : index
    %c0_12 = arith.constant 0 : index
    %14 = vector.load %arg4[%c0_11, %c0_12] : memref<32x128xf32, #tpu.memory_space<vmem>>, vector<32x128xf32>
    tpu.vector_store %arg4[%c0_11, %c0_12], %13 {strides = array<i32>} : memref<32x128xf32, #tpu.memory_space<vmem>>, vector<32x128xf32>,
    return
  }
  func.func @transform_0(%arg0: i32) -> (i32, i32, i32) {
    %c0_i32 = arith.constant 0 : i32
    %c0_i32_0 = arith.constant 0 : i32
    %c0_i32_1 = arith.constant 0 : i32
    %c0_i32_2 = arith.constant 0 : i32
    return %c0_i32, %c0_i32_0, %c0_i32_1 : i32, i32, i32
  }
  func.func @transform_1(%arg0: i32) -> (i32, i32) {
    %c0_i32 = arith.constant 0 : i32
    %c0_i32_0 = arith.constant 0 : i32
    %c0_i32_1 = arith.constant 0 : i32
    return %c0_i32, %c0_i32_0 : i32, i32
  }
  func.func @transform_2(%arg0: i32) -> (i32, i32) {
    %c0_i32 = arith.constant 0 : i32
    %c0_i32_0 = arith.constant 0 : i32
    %c0_i32_1 = arith.constant 0 : i32
    return %c0_i32, %c0_i32_0 : i32, i32
  }
  func.func @transform_3(%arg0: i32) -> (i32, i32) {
    %c0_i32 = arith.constant 0 : i32
    %c0_i32_0 = arith.constant 0 : i32
    %c0_i32_1 = arith.constant 0 : i32
    return %c0_i32, %c0_i32_0 : i32, i32
  }
}

</mosaic_0001>

<llo_original>
// kernel: tile.8
$region0: #{tile.8}
  #allocation0 [shape = 's32[1]{0}', space=sflag, size = 0x4, scoped, tag = 'scoped memory for tile.8']
  %s0 = inlined_call_operand.vmem [shape: f32[8], index: 0, kind: input, shape index: {}]
  %s1 = inlined_call_operand.vmem [shape: f32[16,8], index: 1, kind: output, shape index: {}]
  // Predicated region
  $region2: #{tile.8} parent=0 // pred_check
    _
  $region3: #{tile.8} parent=0 // pred_check_branch
    %3 = sbr.rel (0) target = $region5
  $region4: #{tile.8} parent=0 // pred_region
    _
  $region5: #{tile.8} parent=0 // pred_fallthru
    _
  %v4 = vld [vmem:[%s0] ss:$0 sm:$0xff]
  %5 = vst [vmem:[%s1] sm:$0xff] %v4
  %s6 = scalar_lea.vmem %s1, 8
  %7 = vst [vmem:[%s6] sm:$0xff] %v4

// kernel: tile.9
$region0: #{tile.9}
  %s0 = inlined_call_operand.vmem [shape: f32[16,8], index: 0, kind: input, shape index: {}]
  %s1 = inlined_call_operand.vmem [shape: f32[1,128], index: 1, kind: output, shape index: {}]
  $region1: #{tile.9} parent=0
    #allocation0 [shape = 'u8[4096]{0}', space=vmem, size = 0x1000, scoped, tag = 'scoped mem for output reshape']
    %v2 = vld [vmem:[%s0] sm:$0x1]
    %vm3 = vcmask 64512
    %4 = vst.msk [vmem:[#allocation0] sm:$0x1] %vm3, %v2
    %s5 = scalar_lea.vmem %s0, 15
    %v6 = vld [vmem:[%s5] sm:$0x1]
    %7 = vrot.lane.b32.xlu0 %v6, 120
    %v8 = vpop.permute.xlu0 %7
    %vm9 = vcmask 1048512
    %10 = vst.msk [vmem:[#allocation0] sm:$0x1] %vm9, %v8
    %s11 = scalar_lea.vmem %s0, 14
    %v12 = vld [vmem:[%s11] sm:$0x1]
    %13 = vrot.lane.b32.xlu0 %v12, 112
    %v14 = vpop.permute.xlu0 %13
    %vm15 = vcmask 982912
    %16 = vst.msk [vmem:[#allocation0] sm:$0x1] %vm15, %v14
    %s17 = scalar_lea.vmem %s0, 13
    %v18 = vld [vmem:[%s17] sm:$0x1]
    %19 = vrot.lane.b32.xlu0 %v18, 104
    %v20 = vpop.permute.xlu0 %19
    %vm21 = vcmask 917312
    %22 = vst.msk [vmem:[#allocation0] sm:$0x1] %vm21, %v20
    %s23 = scalar_lea.vmem %s0, 12
    %v24 = vld [vmem:[%s23] sm:$0x1]
    %25 = vrot.lane.b32.xlu0 %v24, 96
    %v26 = vpop.permute.xlu0 %25
    %vm27 = vcmask 851712
    %28 = vst.msk [vmem:[#allocation0] sm:$0x1] %vm27, %v26
    %s29 = scalar_lea.vmem %s0, 11
    %v30 = vld [vmem:[%s29] sm:$0x1]
    %31 = vrot.lane.b32.xlu0 %v30, 88
    %v32 = vpop.permute.xlu0 %31
    %vm33 = vcmask 786112
    %34 = vst.msk [vmem:[#allocation0] sm:$0x1] %vm33, %v32
    %s35 = scalar_lea.vmem %s0, 10
    %v36 = vld [vmem:[%s35] sm:$0x1]
    %37 = vrot.lane.b32.xlu0 %v36, 80
    %v38 = vpop.permute.xlu0 %37
    %vm39 = vcmask 720512
    %40 = vst.msk [vmem:[#allocation0] sm:$0x1] %vm39, %v38
    %s41 = scalar_lea.vmem %s0, 9
    %v42 = vld [vmem:[%s41] sm:$0x1]
    %43 = vrot.lane.b32.xlu0 %v42, 72
    %v44 = vpop.permute.xlu0 %43
    %vm45 = vcmask 654912
    %46 = vst.msk [vmem:[#allocation0] sm:$0x1] %vm45, %v44
    %s47 = scalar_lea.vmem %s0, 8
    %v48 = vld [vmem:[%s47] sm:$0x1]
    %49 = vrot.lane.b32.xlu0 %v48, 64
    %v50 = vpop.permute.xlu0 %49
    %vm51 = vcmask 589312
    %52 = vst.msk [vmem:[#allocation0] sm:$0x1] %vm51, %v50
    %s53 = scalar_lea.vmem %s0, 7
    %v54 = vld [vmem:[%s53] sm:$0x1]
    %55 = vrot.lane.b32.xlu0 %v54, 56
    %v56 = vpop.permute.xlu0 %55
    %vm57 = vcmask 523712
    %58 = vst.msk [vmem:[#allocation0] sm:$0x1] %vm57, %v56
    %s59 = scalar_lea.vmem %s0, 6
    %v60 = vld [vmem:[%s59] sm:$0x1]
    %61 = vrot.lane.b32.xlu0 %v60, 48
    %v62 = vpop.permute.xlu0 %61
    %vm63 = vcmask 458112
    %64 = vst.msk [vmem:[#allocation0] sm:$0x1] %vm63, %v62
    %s65 = scalar_lea.vmem %s0, 5
    %v66 = vld [vmem:[%s65] sm:$0x1]
    %67 = vrot.lane.b32.xlu0 %v66, 40
    %v68 = vpop.permute.xlu0 %67
    %vm69 = vcmask 392512
    %70 = vst.msk [vmem:[#allocation0] sm:$0x1] %vm69, %v68
    %s71 = scalar_lea.vmem %s0, 4
    %v72 = vld [vmem:[%s71] sm:$0x1]
    %73 = vrot.lane.b32.xlu0 %v72, 32
    %v74 = vpop.permute.xlu0 %73
    %vm75 = vcmask 326912
    %76 = vst.msk [vmem:[#allocation0] sm:$0x1] %vm75, %v74
    %s77 = scalar_lea.vmem %s0, 3
    %v78 = vld [vmem:[%s77] sm:$0x1]
    %79 = vrot.lane.b32.xlu0 %v78, 24
    %v80 = vpop.permute.xlu0 %79
    %vm81 = vcmask 261312
    %82 = vst.msk [vmem:[#allocation0] sm:$0x1] %vm81, %v80
    %s83 = scalar_lea.vmem %s0, 2
    %v84 = vld [vmem:[%s83] sm:$0x1]
    %85 = vrot.lane.b32.xlu0 %v84, 16
    %v86 = vpop.permute.xlu0 %85
    %vm87 = vcmask 195712
    %88 = vst.msk [vmem:[#allocation0] sm:$0x1] %vm87, %v86
    %s89 = scalar_lea.vmem %s0, 1
    %v90 = vld [vmem:[%s89] sm:$0x1]
    %91 = vrot.lane.b32.xlu0 %v90, 8
    %v92 = vpop.permute.xlu0 %91
    %vm93 = vcmask 130112
    %94 = vst.msk [vmem:[#allocation0] sm:$0x1] %vm93, %v92
    %s96 = ssub.s32 2, 1
    %v97 = vld [vmem:[#allocation0] sm:%s96]
    %s99 = ssub.s32 2, 1
    %100 = vst [vmem:[%s1] sm:%s99] %v97

// kernel: conv3x3_relu_pallas.1
$region0: #{conv3x3_relu_pallas.1}
  #allocation0 [shape = 'u32[]', space=smem, size = 0x4, offset = 0x4, fixed_abs, tag = 'smem constant byte address 0x4 - core index']
  #allocation1 [shape = 'u32[72,128]{1,0:T(1,128)}', space=vmem, size = 0x9000, scoped, tag = 'internal scratch']
  %s0 = inlined_call_operand.vmem [shape: f32[2,18,128], index: 0, kind: input, shape index: {}]
  %s1 = inlined_call_operand.vmem [shape: f32[384,128], index: 1, kind: input, shape index: {}]
  %s2 = inlined_call_operand.vmem [shape: f32[1,128], index: 2, kind: input, shape index: {}]
  %s3 = inlined_call_operand.vmem [shape: f32[32,128], index: 3, kind: output, shape index: {}]
  %s4 = sld [smem:[#allocation0]]
  $region22: #{conv3x3_relu_pallas.1} parent=0
    _
  %s6 = ssub.s32 1, %s4
  %s7 = scalar_select 0, %s6, %s4
  // Predicated region
  $region2: #{conv3x3_relu_pallas.1} parent=0 // pred_check
    _
  $region3: #{conv3x3_relu_pallas.1} parent=0 // pred_check_branch
    %9 = sbr.rel (0) target = $region5
  $region4: #{conv3x3_relu_pallas.1} parent=0 // pred_region
    _
  $region5: #{conv3x3_relu_pallas.1} parent=0 // pred_fallthru
    _
  // Predicated region
  $region6: #{conv3x3_relu_pallas.1} parent=0 // pred_check
    _
  $region7: #{conv3x3_relu_pallas.1} parent=0 // pred_check_branch
    %11 = sbr.rel (0) target = $region9
  $region8: #{conv3x3_relu_pallas.1} parent=0 // pred_region
    _
  $region9: #{conv3x3_relu_pallas.1} parent=0 // pred_fallthru
    _
  // Predicated region
  $region10: #{conv3x3_relu_pallas.1} parent=0 // pred_check
    _
  $region11: #{conv3x3_relu_pallas.1} parent=0 // pred_check_branch
    %13 = sbr.rel (0) target = $region13
  $region12: #{conv3x3_relu_pallas.1} parent=0 // pred_region
    _
  $region13: #{conv3x3_relu_pallas.1} parent=0 // pred_fallthru
    _
  %v14 = vld [vmem:[%s0] sm:$0xff]
  %v15 = vld [vmem:[%s0 + $0x8] sm:$0xff]
  %v16 = vld [vmem:[%s0 + $0x18] sm:$0xff]
  %v17 = vld [vmem:[%s0 + $0x20] sm:$0xff]
  %v18 = vld [vmem:[%s0 + $0x1] sm:$0xff]
  %v19 = vld [vmem:[%s0 + $0x9] sm:$0xff]
  %v20 = vld [vmem:[%s0 + $0x19] sm:$0xff]
  %v21 = vld [vmem:[%s0 + $0x21] sm:$0xff]
  %v22 = vld [vmem:[%s0 + $0x2] sm:$0xff]
  %v23 = vld [vmem:[%s0 + $0xa] sm:$0xff]
  %v24 = vld [vmem:[%s0 + $0x1a] sm:$0xff]
  %v25 = vld [vmem:[%s0 + $0x22] sm:$0xff]
  %v26 = vld [vmem:[%s1] sm:$0xff]
  %v27 = vld [vmem:[%s1 + $0x8] sm:$0xff]
  %v28 = vld [vmem:[%s1 + $0x10] sm:$0xff]
  %v29 = vld [vmem:[%s1 + $0x18] sm:$0xff]
  %v30 = vld [vmem:[%s1 + $0x20] sm:$0xff]
  %v31 = vld [vmem:[%s1 + $0x28] sm:$0xff]
  %v32 = vld [vmem:[%s1 + $0x30] sm:$0xff]
  %v33 = vld [vmem:[%s1 + $0x38] sm:$0xff]
  %v34 = vld [vmem:[%s1 + $0x40] sm:$0xff]
  %v35 = vld [vmem:[%s1 + $0x48] sm:$0xff]
  %v36 = vld [vmem:[%s1 + $0x50] sm:$0xff]
  %v37 = vld [vmem:[%s1 + $0x58] sm:$0xff]
  %v38 = vld [vmem:[%s1 + $0x60] sm:$0xff]
  %v39 = vld [vmem:[%s1 + $0x68] sm:$0xff]
  %v40 = vld [vmem:[%s1 + $0x70] sm:$0xff]
  %v41 = vld [vmem:[%s1 + $0x78] sm:$0xff]
  %v42 = vld [vmem:[%s1 + $0x80] sm:$0xff]
  %v43 = vld [vmem:[%s1 + $0x88] sm:$0xff]
  %v44 = vld [vmem:[%s1 + $0x90] sm:$0xff]
  %v45 = vld [vmem:[%s1 + $0x98] sm:$0xff]
  %v46 = vld [vmem:[%s1 + $0xa0] sm:$0xff]
  %v47 = vld [vmem:[%s1 + $0xa8] sm:$0xff]
  %v48 = vld [vmem:[%s1 + $0xb0] sm:$0xff]
  %v49 = vld [vmem:[%s1 + $0xb8] sm:$0xff]
  %v50 = vld [vmem:[%s1 + $0xc0] sm:$0xff]
  %v51 = vld [vmem:[%s1 + $0xc8] sm:$0xff]
  %v52 = vld [vmem:[%s1 + $0xd0] sm:$0xff]
  %v53 = vld [vmem:[%s1 + $0xd8] sm:$0xff]
  %v54 = vld [vmem:[%s1 + $0xe0] sm:$0xff]
  %v55 = vld [vmem:[%s1 + $0xe8] sm:$0xff]
  %v56 = vld [vmem:[%s1 + $0xf0] sm:$0xff]
  %v57 = vld [vmem:[%s1 + $0xf8] sm:$0xff]
  %v58 = vld [vmem:[%s1 + $0x100] sm:$0xff]
  %v59 = vld [vmem:[%s1 + $0x108] sm:$0xff]
  %v60 = vld [vmem:[%s1 + $0x110] sm:$0xff]
  %v61 = vld [vmem:[%s1 + $0x118] sm:$0xff]
  %v62 = vld [vmem:[%s1 + $0x120] sm:$0xff]
  %v63 = vld [vmem:[%s1 + $0x128] sm:$0xff]
  %v64 = vld [vmem:[%s1 + $0x130] sm:$0xff]
  %v65 = vld [vmem:[%s1 + $0x138] sm:$0xff]
  %v66 = vld [vmem:[%s1 + $0x140] sm:$0xff]
  %v67 = vld [vmem:[%s1 + $0x148] sm:$0xff]
  %v68 = vld [vmem:[%s1 + $0x150] sm:$0xff]
  %v69 = vld [vmem:[%s1 + $0x158] sm:$0xff]
  %v70 = vld [vmem:[%s1 + $0x160] sm:$0xff]
  %v71 = vld [vmem:[%s1 + $0x168] sm:$0xff]
  %v72 = vld [vmem:[%s1 + $0x170] sm:$0xff]
  %v73 = vld [vmem:[%s1 + $0x178] sm:$0xff]
  %v74 = vld [vmem:[%s2] sm:$0x1]
  %v76 = vperm.slane %v74, 0
  %78 = vmatpush.msra.mxu0 %v41
  %79 = vmatpush.msra.mxu0 %v40
  %80 = vmatpush.msra.mxu0 %v39
  %81 = vmatpush.msra.mxu0 %v38
  %82 = vmatpush.msra.mxu0 %v37
  %83 = vmatpush.msra.mxu0 %v36
  %84 = vmatpush.msra.mxu0 %v35
  %85 = vmatpush.msra.mxu0 %v34
  %86 = vmatpush.msra.mxu0 %v33
  %87 = vmatpush.msra.mxu0 %v32
  %88 = vmatpush.msra.mxu0 %v31
  %89 = vmatpush.msra.mxu0 %v30
  %90 = vmatpush.msra.mxu0 %v29
  %91 = vmatpush.msra.mxu0 %v28
  %92 = vmatpush.msra.mxu0 %v27
  %93 = vmatpush.msra.mxu0 %v26
  %94 = vmatmul.f32.gmra.mxu0 %v14
  %v95 = vpop.f32.mrf.mxu0
  %v96 = vadd.f32 %v76, %v95
  %97 = vmatmul.f32.gmra.mxu0 %v15
  %v98 = vpop.f32.mrf.mxu0
  %v99 = vadd.f32 %v76, %v98
  %100 = vmatmul.f32.gmra.mxu0 %v16
  %v101 = vpop.f32.mrf.mxu0
  %v102 = vadd.f32 %v76, %v101
  %103 = vmatmul.f32.gmra.mxu0 %v17
  %v104 = vpop.f32.mrf.mxu0
  %v105 = vadd.f32 %v76, %v104
  %106 = vdwg.mxu0
  %107 = vmatpush.msra.mxu0 %v57
  %108 = vmatpush.msra.mxu0 %v56
  %109 = vmatpush.msra.mxu0 %v55
  %110 = vmatpush.msra.mxu0 %v54
  %111 = vmatpush.msra.mxu0 %v53
  %112 = vmatpush.msra.mxu0 %v52
  %113 = vmatpush.msra.mxu0 %v51
  %114 = vmatpush.msra.mxu0 %v50
  %115 = vmatpush.msra.mxu0 %v49
  %116 = vmatpush.msra.mxu0 %v48
  %117 = vmatpush.msra.mxu0 %v47
  %118 = vmatpush.msra.mxu0 %v46
  %119 = vmatpush.msra.mxu0 %v45
  %120 = vmatpush.msra.mxu0 %v44
  %121 = vmatpush.msra.mxu0 %v43
  %122 = vmatpush.msra.mxu0 %v42
  %123 = vmatmul.f32.gmra.mxu0 %v18
  %v124 = vpop.f32.mrf.mxu0
  %v125 = vadd.f32 %v96, %v124
  %126 = vmatmul.f32.gmra.mxu0 %v19
  %v127 = vpop.f32.mrf.mxu0
  %v128 = vadd.f32 %v99, %v127
  %129 = vmatmul.f32.gmra.mxu0 %v20
  %v130 = vpop.f32.mrf.mxu0
  %v131 = vadd.f32 %v102, %v130
  %132 = vmatmul.f32.gmra.mxu0 %v21
  %v133 = vpop.f32.mrf.mxu0
  %v134 = vadd.f32 %v105, %v133
  %135 = vdwg.mxu0
  %136 = vmatpush.msra.mxu0 %v73
  %137 = vmatpush.msra.mxu0 %v72
  %138 = vmatpush.msra.mxu0 %v71
  %139 = vmatpush.msra.mxu0 %v70
  %140 = vmatpush.msra.mxu0 %v69
  %141 = vmatpush.msra.mxu0 %v68
  %142 = vmatpush.msra.mxu0 %v67
  %143 = vmatpush.msra.mxu0 %v66
  %144 = vmatpush.msra.mxu0 %v65
  %145 = vmatpush.msra.mxu0 %v64
  %146 = vmatpush.msra.mxu0 %v63
  %147 = vmatpush.msra.mxu0 %v62
  %148 = vmatpush.msra.mxu0 %v61
  %149 = vmatpush.msra.mxu0 %v60
  %150 = vmatpush.msra.mxu0 %v59
  %151 = vmatpush.msra.mxu0 %v58
  %152 = vmatmul.f32.gmra.mxu0 %v22
  %v153 = vpop.f32.mrf.mxu0
  %v154 = vadd.f32 %v125, %v153
  %155 = vmatmul.f32.gmra.mxu0 %v23
  %v156 = vpop.f32.mrf.mxu0
  %v157 = vadd.f32 %v128, %v156
  %158 = vmatmul.f32.gmra.mxu0 %v24
  %v159 = vpop.f32.mrf.mxu0
  %v160 = vadd.f32 %v131, %v159
  %161 = vmatmul.f32.gmra.mxu0 %v25
  %v162 = vpop.f32.mrf.mxu0
  %v163 = vadd.f32 %v134, %v162
  %164 = vdwg.mxu0
  %v165 = vmax.f32 %v154, 0.0
  %v166 = vmax.f32 %v157, 0.0
  %v167 = vmax.f32 %v160, 0.0
  %v168 = vmax.f32 %v163, 0.0
  %169 = vst [vmem:[%s3] sm:$0xff] %v165
  %170 = vst [vmem:[%s3 + $0x8] sm:$0xff] %v166
  %171 = vst [vmem:[%s3 + $0x10] sm:$0xff] %v167
  %172 = vst [vmem:[%s3 + $0x18] sm:$0xff] %v168
  // Predicated region
  $region14: #{conv3x3_relu_pallas.1} parent=0 // pred_check
    _
  $region15: #{conv3x3_relu_pallas.1} parent=0 // pred_check_branch
    %174 = sbr.rel (0) target = $region17
  $region16: #{conv3x3_relu_pallas.1} parent=0 // pred_region
    _
  $region17: #{conv3x3_relu_pallas.1} parent=0 // pred_fallthru
    _
  // Predicated region
  $region18: #{conv3x3_relu_pallas.1} parent=0 // pred_check
    _
  $region19: #{conv3x3_relu_pallas.1} parent=0 // pred_check_branch
    %176 = sbr.rel (0) target = $region21
  $region20: #{conv3x3_relu_pallas.1} parent=0 // pred_region
    _
  $region21: #{conv3x3_relu_pallas.1} parent=0 // pred_fallthru
    _

</llo_original>
